<compile_context>
chip_gen: v7x
topology: tpu7x:2x2x1
jax: 0.10.0
libtpu: 0.0.40
codegen_flags: <defaults>
</compile_context>

<pallas_src>
import math

import jax
import jax.numpy as jnp
import numpy as np
from jax.experimental import pallas as pl
from jax.experimental.pallas import tpu as pltpu

BN_EPS = 1e-5


# ----------------------------------------------------------------------------
# helpers (host-side layout plumbing)
# ----------------------------------------------------------------------------
def _same_padding(ih, iw, k, s):
    """Conv2dStaticSamePadding's ZeroPad2d amounts: ((top, bottom), (left, right))."""
    oh, ow = math.ceil(ih / s), math.ceil(iw / s)
    pad_h = max((oh - 1) * s + (k - 1) + 1 - ih, 0)
    pad_w = max((ow - 1) * s + (k - 1) + 1 - iw, 0)
    return (pad_h // 2, pad_h - pad_h // 2), (pad_w // 2, pad_w - pad_w // 2)


def _rearrange_weight(w_oihw, s):
    """Repack (Cout, Cin, k, k) conv weight for the space-to-depth'd input.

    Returns (Kq*Kq, s*s*Cin, Cout) with Kq = ceil(k/s); tap (qh, qw) multiplies
    xs[:, oh+qh, ow+qw, :] where xs channel index = ph*s*Cin + pw*Cin + c.
    """
    w_np = np.asarray(w_oihw, np.float32)
    Cout, Cin, k, _ = w_np.shape
    Kq = -(-k // s)
    wr = np.zeros((Kq, Kq, s, s, Cin, Cout), np.float32)
    for qh in range(Kq):
        for ph in range(s):
            dh = qh * s + ph
            if dh >= k:
                continue
            for qw in range(Kq):
                for pw in range(s):
                    dw = qw * s + pw
                    if dw >= k:
                        continue
                    wr[qh, qw, ph, pw] = w_np[:, :, dh, dw].T        # (Cin, Cout)
    return jnp.asarray(wr.reshape(Kq * Kq, s * s * Cin, Cout))


# ----------------------------------------------------------------------------
# Pallas kernel
# ----------------------------------------------------------------------------
def _make_kernel(Kq, Ho, Wo, Ck, Cout, res_mode, p_t, p_l):
    """res_mode: 0 = no residual, 1 = residual sliced from xs (stride==1),
    2 = residual passed as an extra ref (fallback)."""
    HW = Ho * Wo

    def kernel(*refs):
        if res_mode == 2:
            xs_ref, w_ref, shift_ref, res_ref, out_ref = refs
        else:
            xs_ref, w_ref, shift_ref, out_ref = refs

        # conv as Kq*Kq contiguous-tap matmuls, f32 accumulation on the MXU.
        # BN scale is pre-folded into w_ref on the host.
        acc = jnp.zeros((HW, Cout), jnp.float32)
        for qh in range(Kq):
            for qw in range(Kq):
                patch = xs_ref[0, qh:qh + Ho, qw:qw + Wo, :]          # (Ho, Wo, Ck)
                acc = acc + jnp.dot(
                    patch.reshape(HW, Ck),
                    w_ref[qh * Kq + qw],
                    preferred_element_type=jnp.float32,
                )

        # folded BatchNorm shift (eval mode) + swish
        z = acc + shift_ref[0:1, :]                                   # (HW, Cout)
        y = z * (1.0 / (1.0 + jnp.exp(-z)))                           # x * sigmoid(x)

        if res_mode == 1:
            # stride==1: the (unpadded) input lives inside the padded tile
            y = y + xs_ref[0, p_t:p_t + Ho, p_l:p_l + Wo, :].reshape(HW, Ck)
        elif res_mode == 2:
            y = y + res_ref[0]

        out_ref[0] = y.astype(out_ref.dtype)

    return kernel


# ----------------------------------------------------------------------------
# wrapper
# ----------------------------------------------------------------------------
def res_conv_layer_old(x, conv_w, gamma, beta, run_mean, run_var,
                       *, stride=2, eps=BN_EPS, image_size=128):
    """x: (N, Cin, H, W) f32.  conv_w: (Cout, Cin, k, k) f32 (PyTorch layout)."""
    N, Cin, H, W = x.shape
    Cout, Cin_w, k, k2 = conv_w.shape
    assert Cin_w == Cin and k == k2
    s = stride

    ih, iw = (image_size, image_size) if isinstance(image_size, int) else image_size
    (p_t, p_b), (p_l, p_r) = _same_padding(ih, iw, k, s)

    Hp, Wp = H + p_t + p_b, W + p_l + p_r
    Ho, Wo = (Hp - k) // s + 1, (Wp - k) // s + 1
    Kq = -(-k // s)
    Hq, Wq = Ho + Kq - 1, Wo + Kq - 1
    Hs, Ws = Hq * s, Wq * s
    Ck = s * s * Cin
    HW = Ho * Wo

    # layout: NCHW -> NHWC, static SAME pad, adjust to (Hs, Ws), space-to-depth
    x_nhwc = jnp.transpose(x, (0, 2, 3, 1)).astype(jnp.float32)
    x_pad = jnp.pad(x_nhwc, ((0, 0), (p_t, p_b), (p_l, p_r), (0, 0)))
    if Hs > Hp or Ws > Wp:
        x_pad = jnp.pad(x_pad, ((0, 0), (0, max(Hs - Hp, 0)), (0, max(Ws - Wp, 0)), (0, 0)))
    x_pad = x_pad[:, :Hs, :Ws, :]
    xs = (x_pad.reshape(N, Hq, s, Wq, s, Cin)
               .transpose(0, 1, 3, 2, 4, 5)
               .reshape(N, Hq, Wq, Ck))

    # fold eval-mode BatchNorm: scale goes into the weight, shift stays separate
    scale = gamma.astype(jnp.float32) / jnp.sqrt(run_var.astype(jnp.float32) + eps)
    shift = (beta.astype(jnp.float32)
             - run_mean.astype(jnp.float32) * scale).reshape(1, Cout)
    wr = _rearrange_weight(conv_w, s) * scale[None, None, :]          # (Kq*Kq, Ck, Cout)

    residual = (Cout == Cin and Ho == H and Wo == W)
    if not residual:
        res_mode = 0
    elif s == 1:
        res_mode = 1        # residual is already inside the padded activation tile
    else:
        res_mode = 2        # degenerate fallback: pass the input a second time

    in_specs = [
        pl.BlockSpec((1, Hq, Wq, Ck), lambda n: (n, 0, 0, 0)),        # per-image tile
        pl.BlockSpec((Kq * Kq, Ck, Cout), lambda n: (0, 0, 0)),       # resident weights
        pl.BlockSpec((1, Cout), lambda n: (0, 0)),                    # resident BN shift
    ]
    args = [xs, wr, shift]
    if res_mode == 2:
        in_specs.append(pl.BlockSpec((1, H * W, Cin), lambda n: (n, 0, 0)))
        args.append(x_nhwc.reshape(N, H * W, Cin))

    out = pl.pallas_call(
        _make_kernel(Kq, Ho, Wo, Ck, Cout, res_mode, p_t, p_l),
        grid=(N,),
        in_specs=in_specs,
        out_specs=pl.BlockSpec((1, HW, Cout), lambda n: (n, 0, 0)),
        out_shape=jax.ShapeDtypeStruct((N, HW, Cout), jnp.float32),
        compiler_params=pltpu.CompilerParams(dimension_semantics=("parallel",)),
    )(*args)

    return out.reshape(N, Ho, Wo, Cout).transpose(0, 3, 1, 2)         # back to NCHW


# ----------------------------------------------------------------------------
# pure-JAX reference (eval-mode BN), for a correctness check
# ----------------------------------------------------------------------------
def _reference(x, conv_w, gamma, beta, run_mean, run_var,
               *, stride=2, eps=BN_EPS, image_size=128):
    k = conv_w.shape[-1]
    ih, iw = (image_size, image_size) if isinstance(image_size, int) else image_size
    (p_t, p_b), (p_l, p_r) = _same_padding(ih, iw, k, stride)
    x_nhwc = jnp.transpose(x, (0, 2, 3, 1))
    w_hwio = jnp.transpose(conv_w, (2, 3, 1, 0))
    y = jax.lax.conv_general_dilated(
        x_nhwc, w_hwio, (stride, stride), [(p_t, p_b), (p_l, p_r)],
        dimension_numbers=("NHWC", "HWIO", "NHWC"))
    scale = gamma / jnp.sqrt(run_var + eps)
    shift = beta - run_mean * scale
    z = y * scale + shift
    a = z * jax.nn.sigmoid(z)
    out = jnp.transpose(a, (0, 3, 1, 2))
    if out.shape == x.shape:
        out = out + x
    return out


# ----------------------------------------------------------------------------
if __name__ == "__main__":
    key = jax.random.PRNGKey(0)
    (k_x, k_w1, k_g1, k_b1, k_m1, k_v1,
     k_w2, k_g2, k_b2, k_m2, k_v2) = jax.random.split(key, 11)

    N, Cin, H, W = 2, 4, 16, 16
    x = jax.random.normal(k_x, (N, Cin, H, W), jnp.float32)

    # --- test 1: default ResConvLayerOld(4, 8) -> kernel=3, stride=2 (no residual)
    Cout = 8
    w1 = jax.random.normal(k_w1, (Cout, Cin, 3, 3), jnp.float32) * 0.2
    g1 = jax.random.uniform(k_g1, (Cout,), jnp.float32, 0.5, 1.5)
    b1 = jax.random.normal(k_b1, (Cout,), jnp.float32) * 0.1
    m1 = jax.random.normal(k_m1, (Cout,), jnp.float32) * 0.1
    v1 = jax.random.uniform(k_v1, (Cout,), jnp.float32, 0.5, 1.5)

    out1 = jax.block_until_ready(res_conv_layer_old(x, w1, g1, b1, m1, v1, stride=2))
    ref1 = _reference(x, w1, g1, b1, m1, v1, stride=2)
    assert out1.shape == (N, Cout, 8, 8), out1.shape
    assert jnp.allclose(out1, ref1, atol=1e-4, rtol=1e-4), "stride-2 path mismatch"

    # --- test 2: stride=1, output_dim == input_dim -> residual add path
    w2 = jax.random.normal(k_w2, (Cin, Cin, 3, 3), jnp.float32) * 0.2
    g2 = jax.random.uniform(k_g2, (Cin,), jnp.float32, 0.5, 1.5)
    b2 = jax.random.normal(k_b2, (Cin,), jnp.float32) * 0.1
    m2 = jax.random.normal(k_m2, (Cin,), jnp.float32) * 0.1
    v2 = jax.random.uniform(k_v2, (Cin,), jnp.float32, 0.5, 1.5)

    out2 = jax.block_until_ready(res_conv_layer_old(x, w2, g2, b2, m2, v2, stride=1))
    ref2 = _reference(x, w2, g2, b2, m2, v2, stride=1)
    assert out2.shape == x.shape, out2.shape
    assert jnp.allclose(out2, ref2, atol=1e-4, rtol=1e-4), "residual path mismatch"

    print("KERNEL_OK")
</pallas_src>

<mosaic_0001>
module attributes {stable_mosaic.version = 11 : i64} {
  func.func @kernel(%arg0: i32, %arg1: memref<1x9x9x16xf32, #tpu.memory_space<vmem>>, %arg2: memref<4x16x8xf32, #tpu.memory_space<vmem>>, %arg3: memref<1x8xf32, #tpu.memory_space<vmem>>, %arg4: memref<1x64x8xf32, #tpu.memory_space<vmem>>) attributes {dimension_semantics = [#tpu.dimension_semantics<parallel>], iteration_bounds = array<i64: 2>, scalar_prefetch = 0 : i64, scratch_operands = 0 : i64, tpu.core_type = #tpu.core_type<tc>, window_params = [{transform_indices = @transform_0, window_bounds = array<i64: 1, 9, 9, 16>}, {pipeline_mode = #tpu.pipeline_mode<synchronous>, transform_indices = @transform_1, window_bounds = array<i64: 4, 16, 8>}, {pipeline_mode = #tpu.pipeline_mode<synchronous>, transform_indices = @transform_2, window_bounds = array<i64: 1, 8>}, {transform_indices = @transform_3, window_bounds = array<i64: 1, 64, 8>}]} {
    %cst = arith.constant 0.000000e+00 : f32
    %0 = vector.broadcast %cst : f32 to vector<64x8xf32>
    %c0 = arith.constant 0 : index
    %c0_0 = arith.constant 0 : index
    %c0_1 = arith.constant 0 : index
    %c0_2 = arith.constant 0 : index
    %1 = vector.load %arg1[%c0, %c0_0, %c0_1, %c0_2] : memref<1x9x9x16xf32, #tpu.memory_space<vmem>>, vector<1x8x8x16xf32>
    %2 = vector.shape_cast %1 : vector<1x8x8x16xf32> to vector<8x8x16xf32>
    %3 = vector.shape_cast %2 : vector<8x8x16xf32> to vector<64x16xf32>
    %c0_3 = arith.constant 0 : index
    %c0_4 = arith.constant 0 : index
    %c0_5 = arith.constant 0 : index
    %4 = vector.load %arg2[%c0_3, %c0_4, %c0_5] : memref<4x16x8xf32, #tpu.memory_space<vmem>>, vector<1x16x8xf32>
    %5 = vector.shape_cast %4 : vector<1x16x8xf32> to vector<16x8xf32>
    %cst_6 = arith.constant dense<0.000000e+00> : vector<64x8xf32>
    %6 = tpu.matmul %3, %5, %cst_6 {dimension_numbers = #tpu.dot_dimension_numbers<[1], [0], [0], [1], [0, 0, 1, 1], [], []>} : vector<64x16xf32>, vector<16x8xf32>, vector<64x8xf32> -> vector<64x8xf32>
    %7 = arith.addf %0, %6 : vector<64x8xf32>
    %c0_7 = arith.constant 0 : index
    %c0_8 = arith.constant 0 : index
    %c1 = arith.constant 1 : index
    %c0_9 = arith.constant 0 : index
    %8 = vector.load %arg1[%c0_7, %c0_8, %c1, %c0_9] : memref<1x9x9x16xf32, #tpu.memory_space<vmem>>, vector<1x8x8x16xf32>
    %9 = vector.shape_cast %8 : vector<1x8x8x16xf32> to vector<8x8x16xf32>
    %10 = vector.shape_cast %9 : vector<8x8x16xf32> to vector<64x16xf32>
    %c1_10 = arith.constant 1 : index
    %c0_11 = arith.constant 0 : index
    %c0_12 = arith.constant 0 : index
    %11 = vector.load %arg2[%c1_10, %c0_11, %c0_12] : memref<4x16x8xf32, #tpu.memory_space<vmem>>, vector<1x16x8xf32>
    %12 = vector.shape_cast %11 : vector<1x16x8xf32> to vector<16x8xf32>
    %cst_13 = arith.constant dense<0.000000e+00> : vector<64x8xf32>
    %13 = tpu.matmul %10, %12, %cst_13 {dimension_numbers = #tpu.dot_dimension_numbers<[1], [0], [0], [1], [0, 0, 1, 1], [], []>} : vector<64x16xf32>, vector<16x8xf32>, vector<64x8xf32> -> vector<64x8xf32>
    %14 = arith.addf %7, %13 : vector<64x8xf32>
    %c0_14 = arith.constant 0 : index
    %c1_15 = arith.constant 1 : index
    %c0_16 = arith.constant 0 : index
    %c0_17 = arith.constant 0 : index
    %15 = vector.load %arg1[%c0_14, %c1_15, %c0_16, %c0_17] : memref<1x9x9x16xf32, #tpu.memory_space<vmem>>, vector<1x8x8x16xf32>
    %16 = vector.shape_cast %15 : vector<1x8x8x16xf32> to vector<8x8x16xf32>
    %17 = vector.shape_cast %16 : vector<8x8x16xf32> to vector<64x16xf32>
    %c2 = arith.constant 2 : index
    %c0_18 = arith.constant 0 : index
    %c0_19 = arith.constant 0 : index
    %18 = vector.load %arg2[%c2, %c0_18, %c0_19] : memref<4x16x8xf32, #tpu.memory_space<vmem>>, vector<1x16x8xf32>
    %19 = vector.shape_cast %18 : vector<1x16x8xf32> to vector<16x8xf32>
    %cst_20 = arith.constant dense<0.000000e+00> : vector<64x8xf32>
    %20 = tpu.matmul %17, %19, %cst_20 {dimension_numbers = #tpu.dot_dimension_numbers<[1], [0], [0], [1], [0, 0, 1, 1], [], []>} : vector<64x16xf32>, vector<16x8xf32>, vector<64x8xf32> -> vector<64x8xf32>
    %21 = arith.addf %14, %20 : vector<64x8xf32>
    %c0_21 = arith.constant 0 : index
    %c1_22 = arith.constant 1 : index
    %c1_23 = arith.constant 1 : index
    %c0_24 = arith.constant 0 : index
    %22 = vector.load %arg1[%c0_21, %c1_22, %c1_23, %c0_24] : memref<1x9x9x16xf32, #tpu.memory_space<vmem>>, vector<1x8x8x16xf32>
    %23 = vector.shape_cast %22 : vector<1x8x8x16xf32> to vector<8x8x16xf32>
    %24 = vector.shape_cast %23 : vector<8x8x16xf32> to vector<64x16xf32>
    %c3 = arith.constant 3 : index
    %c0_25 = arith.constant 0 : index
    %c0_26 = arith.constant 0 : index
    %25 = vector.load %arg2[%c3, %c0_25, %c0_26] : memref<4x16x8xf32, #tpu.memory_space<vmem>>, vector<1x16x8xf32>
    %26 = vector.shape_cast %25 : vector<1x16x8xf32> to vector<16x8xf32>
    %cst_27 = arith.constant dense<0.000000e+00> : vector<64x8xf32>
    %27 = tpu.matmul %24, %26, %cst_27 {dimension_numbers = #tpu.dot_dimension_numbers<[1], [0], [0], [1], [0, 0, 1, 1], [], []>} : vector<64x16xf32>, vector<16x8xf32>, vector<64x8xf32> -> vector<64x8xf32>
    %28 = arith.addf %21, %27 : vector<64x8xf32>
    %c0_28 = arith.constant 0 : index
    %c0_29 = arith.constant 0 : index
    %29 = vector.load %arg3[%c0_28, %c0_29] : memref<1x8xf32, #tpu.memory_space<vmem>>, vector<1x8xf32>
    %30 = vector.broadcast %29 : vector<1x8xf32> to vector<64x8xf32>
    %31 = arith.addf %28, %30 : vector<64x8xf32>
    %cst_30 = arith.constant 0.000000e+00 : f32
    %32 = vector.broadcast %cst_30 : f32 to vector<64x8xf32>
    %33 = arith.subf %32, %31 : vector<64x8xf32>
    %34 = math.exp %33 : vector<64x8xf32>
    %cst_31 = arith.constant 1.000000e+00 : f32
    %35 = vector.broadcast %cst_31 : f32 to vector<64x8xf32>
    %36 = arith.addf %35, %34 : vector<64x8xf32>
    %cst_32 = arith.constant 1.000000e+00 : f32
    %37 = vector.broadcast %cst_32 : f32 to vector<64x8xf32>
    %38 = arith.divf %37, %36 : vector<64x8xf32>
    %39 = arith.mulf %31, %38 : vector<64x8xf32>
    %c0_33 = arith.constant 0 : index
    %c0_34 = arith.constant 0 : index
    %c0_35 = arith.constant 0 : index
    %40 = vector.load %arg4[%c0_33, %c0_34, %c0_35] : memref<1x64x8xf32, #tpu.memory_space<vmem>>, vector<1x64x8xf32>
    %41 = vector.shape_cast %40 : vector<1x64x8xf32> to vector<64x8xf32>
    %42 = vector.shape_cast %39 : vector<64x8xf32> to vector<1x64x8xf32>
    tpu.vector_store %arg4[%c0_33, %c0_34, %c0_35], %42 {strides = array<i32>} : memref<1x64x8xf32, #tpu.memory_space<vmem>>, vector<1x64x8xf32>,
    return
  }
  func.func @transform_0(%arg0: i32) -> (i32, i32, i32, i32) {
    %c0_i32 = arith.constant 0 : i32
    %c0_i32_0 = arith.constant 0 : i32
    %c0_i32_1 = arith.constant 0 : i32
    %c0_i32_2 = arith.constant 0 : i32
    return %arg0, %c0_i32, %c0_i32_0, %c0_i32_1 : i32, i32, i32, i32
  }
  func.func @transform_1(%arg0: i32) -> (i32, i32, i32) {
    %c0_i32 = arith.constant 0 : i32
    %c0_i32_0 = arith.constant 0 : i32
    %c0_i32_1 = arith.constant 0 : i32
    %c0_i32_2 = arith.constant 0 : i32
    return %c0_i32, %c0_i32_0, %c0_i32_1 : i32, i32, i32
  }
  func.func @transform_2(%arg0: i32) -> (i32, i32) {
    %c0_i32 = arith.constant 0 : i32
    %c0_i32_0 = arith.constant 0 : i32
    %c0_i32_1 = arith.constant 0 : i32
    return %c0_i32, %c0_i32_0 : i32, i32
  }
  func.func @transform_3(%arg0: i32) -> (i32, i32, i32) {
    %c0_i32 = arith.constant 0 : i32
    %c0_i32_0 = arith.constant 0 : i32
    %c0_i32_1 = arith.constant 0 : i32
    return %arg0, %c0_i32, %c0_i32_0 : i32, i32, i32
  }
}

</mosaic_0001>

<llo_original>
// kernel: tpu_custom_call.1
$region0: #{tpu_custom_call.1}
  #allocation0 [shape = 'u32[]', space=smem, size = 0x4, offset = 0x4, fixed_abs, tag = 'smem constant byte address 0x4 - core index']
  #allocation1 [shape = 'u32[144,128]{1,0:T(1,128)}', space=vmem, size = 0x12000, scoped, tag = 'internal scratch']
  %s0 = inlined_call_operand.vmem [shape: f32[2,9,9,16], index: 0, kind: input, shape index: {}]
  %s1 = inlined_call_operand.vmem [shape: f32[4,16,8], index: 1, kind: input, shape index: {}]
  %s2 = inlined_call_operand.vmem [shape: f32[1,8], index: 2, kind: input, shape index: {}]
  %s3 = inlined_call_operand.vmem [shape: f32[2,64,8], index: 3, kind: output, shape index: {}]
  %s4 = sld [smem:[#allocation0]]
  $region45: #{tpu_custom_call.1} parent=0
    _
  %s6 = ssub.s32 1, %s4
  %s7 = scalar_select 0, %s6, %s4
  loop: start=0, step=1, limit=4
  $region2: #{tpu_custom_call.1} parent=0 // loop_pre_header
    _
  $region3: #{tpu_custom_call.1} parent=0 // loop_header
    %s9 = sphi 0, %s13
    %p10 = scmp.ge.s32.totalorder %s9, 4
    %s19 = sphi 0, %s21
    %s22 = sphi 0, %s19
    %s23 = sphi 0, %s22
    %s39 = sphi 0, %s23
    %s43 = sphi 0, %s43
    %s45 = sphi 0, %s43
    %s46 = sphi 0, %s45
    %s60 = sphi 0, %s46
    %s64 = sphi 0, %s64
    %s66 = sphi 0, %s64
    %s67 = sphi 0, %s66
    %s81 = sphi 0, %s67
    %s87 = sphi 0, %s89
    %s90 = sphi 0, %s87
    %s91 = sphi 0, %s90
    %s107 = sphi 0, %s91
  $region4: #{tpu_custom_call.1} parent=0 // loop_header_branch
    %12 = sbr.rel (%p10) target = $region8
  $region5: #{tpu_custom_call.1} parent=0 // loop_body
    %s14 = ssub.s32 %s9, 1
    %s15 = ssub.s32 %s9, 2
    %s16 = sadd.s32 %s9, 1
    %s17 = ssub.s32 %s9, %s16
    %p18 = scmp.eq.s32.totalorder %s17, 0
    %s20 = sadd.s32 %s19, 1
    %s21 = scalar_select %p18, %s19, %s20
    %p24 = pneg %p18
    %p25 = scmp.eq.s32.totalorder %s9, 1
    %p26 = por %p24, %p25
    %p27 = scmp.ne.s32.totalorder %s19, %s22
    %p28 = scmp.eq.s32.totalorder %s9, 0
    %p29 = por %p27, %p28
    %p30 = scmp.ne.s32.totalorder %s19, %s22
    %p31 = scmp.eq.s32.totalorder %s14, 1
    %p32 = por %p30, %p31
    %p33 = scmp.ne.s32.totalorder %s22, %s23
    %p34 = scmp.eq.s32.totalorder %s14, 0
    %p35 = por %p33, %p34
    %p36 = scmp.ne.s32.totalorder %s22, %s23
    %p37 = scmp.eq.s32.totalorder %s15, 1
    %p38 = por %p36, %p37
    %p40 = scmp.ne.s32.totalorder %s23, %s39
    %p41 = scmp.eq.s32.totalorder %s15, 0
    %p42 = por %p40, %p41
    %s44 = sadd.s32 %s43, 1
    %p47 = scmp.eq.s32.totalorder %s9, 1
    %p48 = scmp.ne.s32.totalorder %s43, %s45
    %p49 = scmp.eq.s32.totalorder %s9, 0
    %p50 = por %p48, %p49
    %p51 = scmp.ne.s32.totalorder %s43, %s45
    %p52 = scmp.eq.s32.totalorder %s14, 1
    %p53 = por %p51, %p52
    %p54 = scmp.ne.s32.totalorder %s45, %s46
    %p55 = scmp.eq.s32.totalorder %s14, 0
    %p56 = por %p54, %p55
    %p57 = scmp.ne.s32.totalorder %s45, %s46
    %p58 = scmp.eq.s32.totalorder %s15, 1
    %p59 = por %p57, %p58
    %p61 = scmp.ne.s32.totalorder %s46, %s60
    %p62 = scmp.eq.s32.totalorder %s15, 0
    %p63 = por %p61, %p62
    %s65 = sadd.s32 %s64, 1
    %p68 = scmp.eq.s32.totalorder %s9, 1
    %p69 = scmp.ne.s32.totalorder %s64, %s66
    %p70 = scmp.eq.s32.totalorder %s9, 0
    %p71 = por %p69, %p70
    %p72 = scmp.ne.s32.totalorder %s64, %s66
    %p73 = scmp.eq.s32.totalorder %s14, 1
    %p74 = por %p72, %p73
    %p75 = scmp.ne.s32.totalorder %s66, %s67
    %p76 = scmp.eq.s32.totalorder %s14, 0
    %p77 = por %p75, %p76
    %p78 = scmp.ne.s32.totalorder %s66, %s67
    %p79 = scmp.eq.s32.totalorder %s15, 1
    %p80 = por %p78, %p79
    %p82 = scmp.ne.s32.totalorder %s67, %s81
    %p83 = scmp.eq.s32.totalorder %s15, 0
    %p84 = por %p82, %p83
    %s85 = ssub.s32 %s9, %s16
    %p86 = scmp.eq.s32.totalorder %s85, 0
    %s88 = sadd.s32 %s87, 1
    %s89 = scalar_select %p86, %s87, %s88
    %p92 = pneg %p86
    %p93 = scmp.eq.s32.totalorder %s9, 1
    %p94 = por %p92, %p93
    %p95 = scmp.ne.s32.totalorder %s87, %s90
    %p96 = scmp.eq.s32.totalorder %s9, 0
    %p97 = por %p95, %p96
    %p98 = scmp.ne.s32.totalorder %s87, %s90
    %p99 = scmp.eq.s32.totalorder %s14, 1
    %p100 = por %p98, %p99
    %p101 = scmp.ne.s32.totalorder %s90, %s91
    %p102 = scmp.eq.s32.totalorder %s14, 0
    %p103 = por %p101, %p102
    %p104 = scmp.ne.s32.totalorder %s90, %s91
    %p105 = scmp.eq.s32.totalorder %s15, 1
    %p106 = por %p104, %p105
    %p108 = scmp.ne.s32.totalorder %s91, %s107
    %p109 = scmp.eq.s32.totalorder %s15, 0
    %p110 = por %p108, %p109
    %p111 = scmp.le.s32.totalorder 1, %s9
    %p112 = scmp.lt.s32.totalorder %s9, 3
    %p113 = pnand %p111, %p112
    %p114 = pneg %p113
    // Predicated region
    $region9: #{tpu_custom_call.1} parent=5 // pred_check
      _
    $region10: #{tpu_custom_call.1} parent=5 // pred_check_branch
      %116 = sbr.rel (%p113) target = $region12
    $region11: #{tpu_custom_call.1} parent=5 // pred_region
      %s117 = ssub.s32 %s9, 1
      // Predicated region
      $region13: #{tpu_custom_call.1} parent=11 // pred_check
        %p118 = pneg %p56
      $region14: #{tpu_custom_call.1} parent=11 // pred_check_branch
        %120 = sbr.rel (%p118) target = $region16
      $region15: #{tpu_custom_call.1} parent=11 // pred_region
        _
      $region16: #{tpu_custom_call.1} parent=11 // pred_fallthru
        _
      // Predicated region
      $region17: #{tpu_custom_call.1} parent=11 // pred_check
        %p121 = pneg %p77
      $region18: #{tpu_custom_call.1} parent=11 // pred_check_branch
        %123 = sbr.rel (%p121) target = $region20
      $region19: #{tpu_custom_call.1} parent=11 // pred_region
        _
      $region20: #{tpu_custom_call.1} parent=11 // pred_fallthru
        _
    $region12: #{tpu_custom_call.1} parent=5 // pred_fallthru
      _
    %p124 = scmp.lt.s32.totalorder %s9, 2
    // Predicated region
    $region21: #{tpu_custom_call.1} parent=5 // pred_check
      %p125 = pneg %p124
    $region22: #{tpu_custom_call.1} parent=5 // pred_check_branch
      %127 = sbr.rel (%p125) target = $region24
    $region23: #{tpu_custom_call.1} parent=5 // pred_region
      // Predicated region
      $region25: #{tpu_custom_call.1} parent=23 // pred_check
        %p128 = pneg %p29
      $region26: #{tpu_custom_call.1} parent=23 // pred_check_branch
        %130 = sbr.rel (%p128) target = $region28
      $region27: #{tpu_custom_call.1} parent=23 // pred_region
        %p131 = scmp.lt.s32.totalorder %s9, 1
        %s132 = scalar_select %p131, %s9, 1
        %s133 = smul.addr %s132, 18
        %s134 = smul.addr %s133, 8
        %s135 = scalar_lea.vmem %s0, %s134
      $region28: #{tpu_custom_call.1} parent=23 // pred_fallthru
        _
    $region24: #{tpu_custom_call.1} parent=5 // pred_fallthru
      _
    %p136 = scmp.le.s32.totalorder 1, %s9
    %p137 = scmp.lt.s32.totalorder %s9, 3
    %p138 = pnand %p136, %p137
    %p139 = pneg %p138
    // Predicated region
    $region29: #{tpu_custom_call.1} parent=5 // pred_check
      _
    $region30: #{tpu_custom_call.1} parent=5 // pred_check_branch
      %141 = sbr.rel (%p138) target = $region32
    $region31: #{tpu_custom_call.1} parent=5 // pred_region
      %s142 = ssub.s32 %s9, 1
      %p143 = scmp.lt.s32.totalorder %s14, 1
      %s144 = scalar_select %p143, %s14, 1
      %s145 = smul.addr %s144, 18
      %s146 = smul.addr %s145, 8
      %s147 = scalar_lea.vmem %s0, %s146
      %p148 = pneg %p35
      %p149 = pneg %p32
      %p150 = pneg %p56
      %p151 = pneg %p53
      %p152 = pneg %p77
      %p153 = pneg %p74
      %p154 = pneg %p103
      %p155 = pneg %p100
      %p156 = scmp.lt.s32.totalorder %s14, 1
      %s157 = scalar_select %p156, %s14, 1
      %s158 = smul.addr %s157, 8
      %s159 = smul.addr %s158, 8
      %s160 = scalar_lea.vmem %s3, %s159
      %p161 = scmp.lt.s32.totalorder %s14, 1
      %s162 = scalar_select %p161, %s14, 1
      %s163 = smul.addr %s162, 18
      %s164 = smul.addr %s163, 8
      %s165 = scalar_lea.vmem %s0, %s164
      %p166 = scmp.lt.s32.totalorder %s14, 1
      %s167 = scalar_select %p166, %s14, 1
      %s168 = smul.addr %s167, 8
      %s169 = smul.addr %s168, 8
      %s170 = scalar_lea.vmem %s3, %s169
      %v171 = vld [vmem:[%s165] sm:$0xff]
      %v172 = vld [vmem:[%s165 + $0x10] sm:$0xff]
      %v173 = vld [vmem:[%s165 + $0x20] sm:$0xff]
      %v174 = vld [vmem:[%s165 + $0x30] sm:$0xff]
      %v175 = vld [vmem:[%s165 + $0x40] sm:$0xff]
      %v176 = vld [vmem:[%s165 + $0x50] sm:$0xff]
      %v177 = vld [vmem:[%s165 + $0x60] sm:$0xff]
      %v178 = vld [vmem:[%s165 + $0x70] sm:$0xff]
      %v179 = vld [vmem:[%s1] sm:$0xff]
      %v180 = vld [vmem:[%s1 + $0x8] sm:$0xff]
      %v181 = vld [vmem:[%s165 + $0x1] sm:$0xff]
      %v182 = vld [vmem:[%s165 + $0x11] sm:$0xff]
      %v183 = vld [vmem:[%s165 + $0x21] sm:$0xff]
      %v184 = vld [vmem:[%s165 + $0x31] sm:$0xff]
      %v185 = vld [vmem:[%s165 + $0x41] sm:$0xff]
      %v186 = vld [vmem:[%s165 + $0x51] sm:$0xff]
      %v187 = vld [vmem:[%s165 + $0x61] sm:$0xff]
      %v188 = vld [vmem:[%s165 + $0x71] sm:$0xff]
      %s189 = scalar_lea.vmem %s1, 16
      %v190 = vld [vmem:[%s189] sm:$0xff]
      %v191 = vld [vmem:[%s189 + $0x8] sm:$0xff]
      %vm192 = vcmask 130048
      %v194 = vsel %vm192, %v181, 0
      %v197 = vsel %vm192, %v182, 0
      %v200 = vsel %vm192, %v183, 0
      %v203 = vsel %vm192, %v184, 0
      %v206 = vsel %vm192, %v185, 0
      %v209 = vsel %vm192, %v186, 0
      %v212 = vsel %vm192, %v187, 0
      %v215 = vsel %vm192, %v188, 0
      %217 = vmatprep.subr.mxu0 0.0
      %218 = vmatpush1.msra.mxu0 %v190
      %219 = vmatprep.subr.mxu0 0.0
      %220 = vmatpush1.msra.mxu0 %v191
      %221 = vmatprep.subr.mxu0 0.0
      %222 = vmatpush1.msra.mxu0 0.0
      %223 = vmatprep.subr.mxu0 0.0
      %224 = vmatpush1.msra.mxu0 0.0
      %225 = vmatprep.subr.mxu0 0.0
      %226 = vmatpush1.msra.mxu0 0.0
      %227 = vmatprep.subr.mxu0 0.0
      %228 = vmatpush1.msra.mxu0 0.0
      %229 = vmatprep.subr.mxu0 0.0
      %230 = vmatpush1.msra.mxu0 0.0
      %231 = vmatprep.subr.mxu0 0.0
      %232 = vmatpush1.msra.mxu0 0.0
      %233 = vmatprep.subr.mxu0 0.0
      %234 = vmatpush1.msra.mxu0 0.0
      %235 = vmatprep.subr.mxu0 0.0
      %236 = vmatpush1.msra.mxu0 0.0
      %237 = vmatprep.subr.mxu0 0.0
      %238 = vmatpush1.msra.mxu0 0.0
      %239 = vmatprep.subr.mxu0 0.0
      %240 = vmatpush1.msra.mxu0 0.0
      %241 = vmatprep.subr.mxu0 0.0
      %242 = vmatpush1.msra.mxu0 0.0
      %243 = vmatprep.subr.mxu0 0.0
      %244 = vmatpush1.msra.mxu0 0.0
      %245 = vmatprep.subr.mxu0 0.0
      %246 = vmatpush1.msra.mxu0 0.0
      %247 = vmatprep.subr.mxu0 0.0
      %248 = vmatpush1.msra.mxu0 0.0
      %249 = vmatprep.subr.mxu0 0.0
      %250 = vmatpush1.msra.mxu0 0.0
      %251 = vmatprep.subr.mxu0 0.0
      %252 = vmatpush1.msra.mxu0 0.0
      %253 = vmatprep.subr.mxu0 0.0
      %254 = vmatpush1.msra.mxu0 0.0
      %255 = vmatprep.subr.mxu0 0.0
      %256 = vmatpush1.msra.mxu0 0.0
      %257 = vmatprep.subr.mxu0 0.0
      %258 = vmatpush1.msra.mxu0 0.0
      %259 = vmatprep.subr.mxu0 0.0
      %260 = vmatpush1.msra.mxu0 0.0
      %261 = vmatprep.subr.mxu0 0.0
      %262 = vmatpush1.msra.mxu0 0.0
      %263 = vmatprep.subr.mxu0 0.0
      %264 = vmatpush1.msra.mxu0 0.0
      %265 = vmatprep.subr.mxu0 0.0
      %266 = vmatpush1.msra.mxu0 0.0
      %267 = vmatprep.subr.mxu0 0.0
      %268 = vmatpush1.msra.mxu0 0.0
      %269 = vmatprep.subr.mxu0 0.0
      %270 = vmatpush1.msra.mxu0 0.0
      %271 = vmatprep.subr.mxu0 0.0
      %272 = vmatpush1.msra.mxu0 0.0
      %273 = vmatprep.subr.mxu0 0.0
      %274 = vmatpush1.msra.mxu0 0.0
      %275 = vmatprep.subr.mxu0 0.0
      %276 = vmatpush1.msra.mxu0 0.0
      %277 = vmatprep.subr.mxu0 0.0
      %278 = vmatpush1.msra.mxu0 0.0
      %279 = vmatprep.subr.mxu0 0.0
      %280 = vmatpush1.msra.mxu0 0.0
      %281 = vmatprep.mubr.f32.mxu0 0.0
      %282 = vmatmul.mubr.f32.gmra.mrb[0].mxu0 %v194
      %v283 = vpop.f32.mrb[0].mxu0
      %v284 = vadd.f32 0.0, %v283
      %v285 = vpop.f32.mrb[0].mxu0
      %286 = vmatprep.mubr.f32.mxu0 0.0
      %287 = vmatmul.mubr.f32.gmra.mrb[0].mxu0 %v197
      %v288 = vpop.f32.mrb[0].mxu0
      %v289 = vadd.f32 0.0, %v288
      %v290 = vpop.f32.mrb[0].mxu0
      %291 = vmatprep.mubr.f32.mxu0 0.0
      %292 = vmatmul.mubr.f32.gmra.mrb[0].mxu0 %v200
      %v293 = vpop.f32.mrb[0].mxu0
      %v294 = vadd.f32 0.0, %v293
      %v295 = vpop.f32.mrb[0].mxu0
      %296 = vmatprep.mubr.f32.mxu0 0.0
      %297 = vmatmul.mubr.f32.gmra.mrb[0].mxu0 %v203
      %v298 = vpop.f32.mrb[0].mxu0
      %v299 = vadd.f32 0.0, %v298
      %v300 = vpop.f32.mrb[0].mxu0
      %301 = vmatprep.mubr.f32.mxu0 0.0
      %302 = vmatmul.mubr.f32.gmra.mrb[0].mxu0 %v206
      %v303 = vpop.f32.mrb[0].mxu0
      %v304 = vadd.f32 0.0, %v303
      %v305 = vpop.f32.mrb[0].mxu0
      %306 = vmatprep.mubr.f32.mxu0 0.0
      %307 = vmatmul.mubr.f32.gmra.mrb[0].mxu0 %v209
      %v308 = vpop.f32.mrb[0].mxu0
      %v309 = vadd.f32 0.0, %v308
      %v310 = vpop.f32.mrb[0].mxu0
      %311 = vmatprep.mubr.f32.mxu0 0.0
      %312 = vmatmul.mubr.f32.gmra.mrb[0].mxu0 %v212
      %v313 = vpop.f32.mrb[0].mxu0
      %v314 = vadd.f32 0.0, %v313
      %v315 = vpop.f32.mrb[0].mxu0
      %316 = vmatprep.mubr.f32.mxu0 0.0
      %317 = vmatmul.mubr.f32.gmra.mrb[0].mxu0 %v215
      %v318 = vpop.f32.mrb[0].mxu0
      %v319 = vadd.f32 0.0, %v318
      %v320 = vpop.f32.mrb[0].mxu0
      %321 = vdwg.mxu0
      %v323 = vsel %vm192, %v171, 0
      %v326 = vsel %vm192, %v172, 0
      %v329 = vsel %vm192, %v173, 0
      %v332 = vsel %vm192, %v174, 0
      %v335 = vsel %vm192, %v175, 0
      %v338 = vsel %vm192, %v176, 0
      %v341 = vsel %vm192, %v177, 0
      %v344 = vsel %vm192, %v178, 0
      %346 = vmatprep.subr.mxu0 0.0
      %347 = vmatpush1.msra.mxu0 %v179
      %348 = vmatprep.subr.mxu0 0.0
      %349 = vmatpush1.msra.mxu0 %v180
      %350 = vmatprep.subr.mxu0 0.0
      %351 = vmatpush1.msra.mxu0 0.0
      %352 = vmatprep.subr.mxu0 0.0
      %353 = vmatpush1.msra.mxu0 0.0
      %354 = vmatprep.subr.mxu0 0.0
      %355 = vmatpush1.msra.mxu0 0.0
      %356 = vmatprep.subr.mxu0 0.0
      %357 = vmatpush1.msra.mxu0 0.0
      %358 = vmatprep.subr.mxu0 0.0
      %359 = vmatpush1.msra.mxu0 0.0
      %360 = vmatprep.subr.mxu0 0.0
      %361 = vmatpush1.msra.mxu0 0.0
      %362 = vmatprep.subr.mxu0 0.0
      %363 = vmatpush1.msra.mxu0 0.0
      %364 = vmatprep.subr.mxu0 0.0
      %365 = vmatpush1.msra.mxu0 0.0
      %366 = vmatprep.subr.mxu0 0.0
      %367 = vmatpush1.msra.mxu0 0.0
      %368 = vmatprep.subr.mxu0 0.0
      %369 = vmatpush1.msra.mxu0 0.0
      %370 = vmatprep.subr.mxu0 0.0
      %371 = vmatpush1.msra.mxu0 0.0
      %372 = vmatprep.subr.mxu0 0.0
      %373 = vmatpush1.msra.mxu0 0.0
      %374 = vmatprep.subr.mxu0 0.0
      %375 = vmatpush1.msra.mxu0 0.0
      %376 = vmatprep.subr.mxu0 0.0
      %377 = vmatpush1.msra.mxu0 0.0
      %378 = vmatprep.subr.mxu0 0.0
      %379 = vmatpush1.msra.mxu0 0.0
      %380 = vmatprep.subr.mxu0 0.0
      %381 = vmatpush1.msra.mxu0 0.0
      %382 = vmatprep.subr.mxu0 0.0
      %383 = vmatpush1.msra.mxu0 0.0
      %384 = vmatprep.subr.mxu0 0.0
      %385 = vmatpush1.msra.mxu0 0.0
      %386 = vmatprep.subr.mxu0 0.0
      %387 = vmatpush1.msra.mxu0 0.0
      %388 = vmatprep.subr.mxu0 0.0
      %389 = vmatpush1.msra.mxu0 0.0
      %390 = vmatprep.subr.mxu0 0.0
      %391 = vmatpush1.msra.mxu0 0.0
      %392 = vmatprep.subr.mxu0 0.0
      %393 = vmatpush1.msra.mxu0 0.0
      %394 = vmatprep.subr.mxu0 0.0
      %395 = vmatpush1.msra.mxu0 0.0
      %396 = vmatprep.subr.mxu0 0.0
      %397 = vmatpush1.msra.mxu0 0.0
      %398 = vmatprep.subr.mxu0 0.0
      %399 = vmatpush1.msra.mxu0 0.0
      %400 = vmatprep.subr.mxu0 0.0
      %401 = vmatpush1.msra.mxu0 0.0
      %402 = vmatprep.subr.mxu0 0.0
      %403 = vmatpush1.msra.mxu0 0.0
      %404 = vmatprep.subr.mxu0 0.0
      %405 = vmatpush1.msra.mxu0 0.0
      %406 = vmatprep.subr.mxu0 0.0
      %407 = vmatpush1.msra.mxu0 0.0
      %408 = vmatprep.subr.mxu0 0.0
      %409 = vmatpush1.msra.mxu0 0.0
      %410 = vmatprep.mubr.f32.mxu0 0.0
      %411 = vmatmul.mubr.f32.gmra.mrb[0].mxu0 %v323
      %v412 = vpop.f32.mrb[0].mxu0
      %v413 = vadd.f32 %v284, %v412
      %v414 = vpop.f32.mrb[0].mxu0
      %415 = vmatprep.mubr.f32.mxu0 0.0
      %416 = vmatmul.mubr.f32.gmra.mrb[0].mxu0 %v326
      %v417 = vpop.f32.mrb[0].mxu0
      %v418 = vadd.f32 %v289, %v417
      %v419 = vpop.f32.mrb[0].mxu0
      %420 = vmatprep.mubr.f32.mxu0 0.0
      %421 = vmatmul.mubr.f32.gmra.mrb[0].mxu0 %v329
      %v422 = vpop.f32.mrb[0].mxu0
      %v423 = vadd.f32 %v294, %v422
      %v424 = vpop.f32.mrb[0].mxu0
      %425 = vmatprep.mubr.f32.mxu0 0.0
      %426 = vmatmul.mubr.f32.gmra.mrb[0].mxu0 %v332
      %v427 = vpop.f32.mrb[0].mxu0
      %v428 = vadd.f32 %v299, %v427
      %v429 = vpop.f32.mrb[0].mxu0
      %430 = vmatprep.mubr.f32.mxu0 0.0
      %431 = vmatmul.mubr.f32.gmra.mrb[0].mxu0 %v335
      %v432 = vpop.f32.mrb[0].mxu0
      %v433 = vadd.f32 %v304, %v432
      %v434 = vpop.f32.mrb[0].mxu0
      %435 = vmatprep.mubr.f32.mxu0 0.0
      %436 = vmatmul.mubr.f32.gmra.mrb[0].mxu0 %v338
      %v437 = vpop.f32.mrb[0].mxu0
      %v438 = vadd.f32 %v309, %v437
      %v439 = vpop.f32.mrb[0].mxu0
      %440 = vmatprep.mubr.f32.mxu0 0.0
      %441 = vmatmul.mubr.f32.gmra.mrb[0].mxu0 %v341
      %v442 = vpop.f32.mrb[0].mxu0
      %v443 = vadd.f32 %v314, %v442
      %v444 = vpop.f32.mrb[0].mxu0
      %445 = vmatprep.mubr.f32.mxu0 0.0
      %446 = vmatmul.mubr.f32.gmra.mrb[0].mxu0 %v344
      %v447 = vpop.f32.mrb[0].mxu0
      %v448 = vadd.f32 %v319, %v447
      %v449 = vpop.f32.mrb[0].mxu0
      %450 = vdwg.mxu0
      %s451 = scalar_lea.vmem %s165, 16
      %v452 = vld [vmem:[%s451] sm:$0xff]
      %v453 = vld [vmem:[%s451 + $0x10] sm:$0xff]
      %v454 = vld [vmem:[%s451 + $0x20] sm:$0xff]
      %v455 = vld [vmem:[%s451 + $0x30] sm:$0xff]
      %v456 = vld [vmem:[%s451 + $0x40] sm:$0xff]
      %v457 = vld [vmem:[%s451 + $0x50] sm:$0xff]
      %v458 = vld [vmem:[%s451 + $0x60] sm:$0xff]
      %v459 = vld [vmem:[%s451 + $0x70] sm:$0xff]
      %s460 = scalar_lea.vmem %s1, 32
      %v461 = vld [vmem:[%s460] sm:$0xff]
      %v462 = vld [vmem:[%s460 + $0x8] sm:$0xff]
      %v464 = vsel %vm192, %v452, 0
      %v467 = vsel %vm192, %v453, 0
      %v470 = vsel %vm192, %v454, 0
      %v473 = vsel %vm192, %v455, 0
      %v476 = vsel %vm192, %v456, 0
      %v479 = vsel %vm192, %v457, 0
      %v482 = vsel %vm192, %v458, 0
      %v485 = vsel %vm192, %v459, 0
      %487 = vmatprep.subr.mxu0 0.0
      %488 = vmatpush1.msra.mxu0 %v461
      %489 = vmatprep.subr.mxu0 0.0
      %490 = vmatpush1.msra.mxu0 %v462
      %491 = vmatprep.subr.mxu0 0.0
      %492 = vmatpush1.msra.mxu0 0.0
      %493 = vmatprep.subr.mxu0 0.0
      %494 = vmatpush1.msra.mxu0 0.0
      %495 = vmatprep.subr.mxu0 0.0
      %496 = vmatpush1.msra.mxu0 0.0
      %497 = vmatprep.subr.mxu0 0.0
      %498 = vmatpush1.msra.mxu0 0.0
      %499 = vmatprep.subr.mxu0 0.0
      %500 = vmatpush1.msra.mxu0 0.0
      %501 = vmatprep.subr.mxu0 0.0
      %502 = vmatpush1.msra.mxu0 0.0
      %503 = vmatprep.subr.mxu0 0.0
      %504 = vmatpush1.msra.mxu0 0.0
      %505 = vmatprep.subr.mxu0 0.0
      %506 = vmatpush1.msra.mxu0 0.0
      %507 = vmatprep.subr.mxu0 0.0
      %508 = vmatpush1.msra.mxu0 0.0
      %509 = vmatprep.subr.mxu0 0.0
      %510 = vmatpush1.msra.mxu0 0.0
      %511 = vmatprep.subr.mxu0 0.0
      %512 = vmatpush1.msra.mxu0 0.0
      %513 = vmatprep.subr.mxu0 0.0
      %514 = vmatpush1.msra.mxu0 0.0
      %515 = vmatprep.subr.mxu0 0.0
      %516 = vmatpush1.msra.mxu0 0.0
      %517 = vmatprep.subr.mxu0 0.0
      %518 = vmatpush1.msra.mxu0 0.0
      %519 = vmatprep.subr.mxu0 0.0
      %520 = vmatpush1.msra.mxu0 0.0
      %521 = vmatprep.subr.mxu0 0.0
      %522 = vmatpush1.msra.mxu0 0.0
      %523 = vmatprep.subr.mxu0 0.0
      %524 = vmatpush1.msra.mxu0 0.0
      %525 = vmatprep.subr.mxu0 0.0
      %526 = vmatpush1.msra.mxu0 0.0
      %527 = vmatprep.subr.mxu0 0.0
      %528 = vmatpush1.msra.mxu0 0.0
      %529 = vmatprep.subr.mxu0 0.0
      %530 = vmatpush1.msra.mxu0 0.0
      %531 = vmatprep.subr.mxu0 0.0
      %532 = vmatpush1.msra.mxu0 0.0
      %533 = vmatprep.subr.mxu0 0.0
      %534 = vmatpush1.msra.mxu0 0.0
      %535 = vmatprep.subr.mxu0 0.0
      %536 = vmatpush1.msra.mxu0 0.0
      %537 = vmatprep.subr.mxu0 0.0
      %538 = vmatpush1.msra.mxu0 0.0
      %539 = vmatprep.subr.mxu0 0.0
      %540 = vmatpush1.msra.mxu0 0.0
      %541 = vmatprep.subr.mxu0 0.0
      %542 = vmatpush1.msra.mxu0 0.0
      %543 = vmatprep.subr.mxu0 0.0
      %544 = vmatpush1.msra.mxu0 0.0
      %545 = vmatprep.subr.mxu0 0.0
      %546 = vmatpush1.msra.mxu0 0.0
      %547 = vmatprep.subr.mxu0 0.0
      %548 = vmatpush1.msra.mxu0 0.0
      %549 = vmatprep.subr.mxu0 0.0
      %550 = vmatpush1.msra.mxu0 0.0
      %551 = vmatprep.mubr.f32.mxu0 0.0
      %552 = vmatmul.mubr.f32.gmra.mrb[0].mxu0 %v464
      %v553 = vpop.f32.mrb[0].mxu0
      %v554 = vadd.f32 0.0, %v553
      %v555 = vpop.f32.mrb[0].mxu0
      %556 = vmatprep.mubr.f32.mxu0 0.0
      %557 = vmatmul.mubr.f32.gmra.mrb[0].mxu0 %v467
      %v558 = vpop.f32.mrb[0].mxu0
      %v559 = vadd.f32 0.0, %v558
      %v560 = vpop.f32.mrb[0].mxu0
      %561 = vmatprep.mubr.f32.mxu0 0.0
      %562 = vmatmul.mubr.f32.gmra.mrb[0].mxu0 %v470
      %v563 = vpop.f32.mrb[0].mxu0
      %v564 = vadd.f32 0.0, %v563
      %v565 = vpop.f32.mrb[0].mxu0
      %566 = vmatprep.mubr.f32.mxu0 0.0
      %567 = vmatmul.mubr.f32.gmra.mrb[0].mxu0 %v473
      %v568 = vpop.f32.mrb[0].mxu0
      %v569 = vadd.f32 0.0, %v568
      %v570 = vpop.f32.mrb[0].mxu0
      %571 = vmatprep.mubr.f32.mxu0 0.0
      %572 = vmatmul.mubr.f32.gmra.mrb[0].mxu0 %v476
      %v573 = vpop.f32.mrb[0].mxu0
      %v574 = vadd.f32 0.0, %v573
      %v575 = vpop.f32.mrb[0].mxu0
      %576 = vmatprep.mubr.f32.mxu0 0.0
      %577 = vmatmul.mubr.f32.gmra.mrb[0].mxu0 %v479
      %v578 = vpop.f32.mrb[0].mxu0
      %v579 = vadd.f32 0.0, %v578
      %v580 = vpop.f32.mrb[0].mxu0
      %581 = vmatprep.mubr.f32.mxu0 0.0
      %582 = vmatmul.mubr.f32.gmra.mrb[0].mxu0 %v482
      %v583 = vpop.f32.mrb[0].mxu0
      %v584 = vadd.f32 0.0, %v583
      %v585 = vpop.f32.mrb[0].mxu0
      %586 = vmatprep.mubr.f32.mxu0 0.0
      %587 = vmatmul.mubr.f32.gmra.mrb[0].mxu0 %v485
      %v588 = vpop.f32.mrb[0].mxu0
      %v589 = vadd.f32 0.0, %v588
      %v590 = vpop.f32.mrb[0].mxu0
      %591 = vdwg.mxu0
      %v592 = vadd.f32 %v413, %v554
      %v593 = vadd.f32 %v418, %v559
      %v594 = vadd.f32 %v423, %v564
      %v595 = vadd.f32 %v428, %v569
      %v596 = vadd.f32 %v433, %v574
      %v597 = vadd.f32 %v438, %v579
      %v598 = vadd.f32 %v443, %v584
      %v599 = vadd.f32 %v448, %v589
      %v600 = vld [vmem:[%s451 + $0x1] sm:$0xff]
      %v601 = vld [vmem:[%s451 + $0x11] sm:$0xff]
      %v602 = vld [vmem:[%s451 + $0x21] sm:$0xff]
      %v603 = vld [vmem:[%s451 + $0x31] sm:$0xff]
      %v604 = vld [vmem:[%s451 + $0x41] sm:$0xff]
      %v605 = vld [vmem:[%s451 + $0x51] sm:$0xff]
      %v606 = vld [vmem:[%s451 + $0x61] sm:$0xff]
      %v607 = vld [vmem:[%s451 + $0x71] sm:$0xff]
      %s608 = scalar_lea.vmem %s1, 48
      %v609 = vld [vmem:[%s608] sm:$0xff]
      %v610 = vld [vmem:[%s608 + $0x8] sm:$0xff]
      %v612 = vsel %vm192, %v600, 0
      %v615 = vsel %vm192, %v601, 0
      %v618 = vsel %vm192, %v602, 0
      %v621 = vsel %vm192, %v603, 0
      %v624 = vsel %vm192, %v604, 0
      %v627 = vsel %vm192, %v605, 0
      %v630 = vsel %vm192, %v606, 0
      %v633 = vsel %vm192, %v607, 0
      %635 = vmatprep.subr.mxu0 0.0
      %636 = vmatpush1.msra.mxu0 %v609
      %637 = vmatprep.subr.mxu0 0.0
      %638 = vmatpush1.msra.mxu0 %v610
      %639 = vmatprep.subr.mxu0 0.0
      %640 = vmatpush1.msra.mxu0 0.0
      %641 = vmatprep.subr.mxu0 0.0
      %642 = vmatpush1.msra.mxu0 0.0
      %643 = vmatprep.subr.mxu0 0.0
      %644 = vmatpush1.msra.mxu0 0.0
      %645 = vmatprep.subr.mxu0 0.0
      %646 = vmatpush1.msra.mxu0 0.0
      %647 = vmatprep.subr.mxu0 0.0
      %648 = vmatpush1.msra.mxu0 0.0
      %649 = vmatprep.subr.mxu0 0.0
      %650 = vmatpush1.msra.mxu0 0.0
      %651 = vmatprep.subr.mxu0 0.0
      %652 = vmatpush1.msra.mxu0 0.0
      %653 = vmatprep.subr.mxu0 0.0
      %654 = vmatpush1.msra.mxu0 0.0
      %655 = vmatprep.subr.mxu0 0.0
      %656 = vmatpush1.msra.mxu0 0.0
      %657 = vmatprep.subr.mxu0 0.0
      %658 = vmatpush1.msra.mxu0 0.0
      %659 = vmatprep.subr.mxu0 0.0
      %660 = vmatpush1.msra.mxu0 0.0
      %661 = vmatprep.subr.mxu0 0.0
      %662 = vmatpush1.msra.mxu0 0.0
      %663 = vmatprep.subr.mxu0 0.0
      %664 = vmatpush1.msra.mxu0 0.0
      %665 = vmatprep.subr.mxu0 0.0
      %666 = vmatpush1.msra.mxu0 0.0
      %667 = vmatprep.subr.mxu0 0.0
      %668 = vmatpush1.msra.mxu0 0.0
      %669 = vmatprep.subr.mxu0 0.0
      %670 = vmatpush1.msra.mxu0 0.0
      %671 = vmatprep.subr.mxu0 0.0
      %672 = vmatpush1.msra.mxu0 0.0
      %673 = vmatprep.subr.mxu0 0.0
      %674 = vmatpush1.msra.mxu0 0.0
      %675 = vmatprep.subr.mxu0 0.0
      %676 = vmatpush1.msra.mxu0 0.0
      %677 = vmatprep.subr.mxu0 0.0
      %678 = vmatpush1.msra.mxu0 0.0
      %679 = vmatprep.subr.mxu0 0.0
      %680 = vmatpush1.msra.mxu0 0.0
      %681 = vmatprep.subr.mxu0 0.0
      %682 = vmatpush1.msra.mxu0 0.0
      %683 = vmatprep.subr.mxu0 0.0
      %684 = vmatpush1.msra.mxu0 0.0
      %685 = vmatprep.subr.mxu0 0.0
      %686 = vmatpush1.msra.mxu0 0.0
      %687 = vmatprep.subr.mxu0 0.0
      %688 = vmatpush1.msra.mxu0 0.0
      %689 = vmatprep.subr.mxu0 0.0
      %690 = vmatpush1.msra.mxu0 0.0
      %691 = vmatprep.subr.mxu0 0.0
      %692 = vmatpush1.msra.mxu0 0.0
      %693 = vmatprep.subr.mxu0 0.0
      %694 = vmatpush1.msra.mxu0 0.0
      %695 = vmatprep.subr.mxu0 0.0
      %696 = vmatpush1.msra.mxu0 0.0
      %697 = vmatprep.subr.mxu0 0.0
      %698 = vmatpush1.msra.mxu0 0.0
      %699 = vmatprep.mubr.f32.mxu0 0.0
      %700 = vmatmul.mubr.f32.gmra.mrb[0].mxu0 %v612
      %v701 = vpop.f32.mrb[0].mxu0
      %v702 = vadd.f32 0.0, %v701
      %v703 = vpop.f32.mrb[0].mxu0
      %704 = vmatprep.mubr.f32.mxu0 0.0
      %705 = vmatmul.mubr.f32.gmra.mrb[0].mxu0 %v615
      %v706 = vpop.f32.mrb[0].mxu0
      %v707 = vadd.f32 0.0, %v706
      %v708 = vpop.f32.mrb[0].mxu0
      %709 = vmatprep.mubr.f32.mxu0 0.0
      %710 = vmatmul.mubr.f32.gmra.mrb[0].mxu0 %v618
      %v711 = vpop.f32.mrb[0].mxu0
      %v712 = vadd.f32 0.0, %v711
      %v713 = vpop.f32.mrb[0].mxu0
      %714 = vmatprep.mubr.f32.mxu0 0.0
      %715 = vmatmul.mubr.f32.gmra.mrb[0].mxu0 %v621
      %v716 = vpop.f32.mrb[0].mxu0
      %v717 = vadd.f32 0.0, %v716
      %v718 = vpop.f32.mrb[0].mxu0
      %719 = vmatprep.mubr.f32.mxu0 0.0
      %720 = vmatmul.mubr.f32.gmra.mrb[0].mxu0 %v624
      %v721 = vpop.f32.mrb[0].mxu0
      %v722 = vadd.f32 0.0, %v721
      %v723 = vpop.f32.mrb[0].mxu0
      %724 = vmatprep.mubr.f32.mxu0 0.0
      %725 = vmatmul.mubr.f32.gmra.mrb[0].mxu0 %v627
      %v726 = vpop.f32.mrb[0].mxu0
      %v727 = vadd.f32 0.0, %v726
      %v728 = vpop.f32.mrb[0].mxu0
      %729 = vmatprep.mubr.f32.mxu0 0.0
      %730 = vmatmul.mubr.f32.gmra.mrb[0].mxu0 %v630
      %v731 = vpop.f32.mrb[0].mxu0
      %v732 = vadd.f32 0.0, %v731
      %v733 = vpop.f32.mrb[0].mxu0
      %734 = vmatprep.mubr.f32.mxu0 0.0
      %735 = vmatmul.mubr.f32.gmra.mrb[0].mxu0 %v633
      %v736 = vpop.f32.mrb[0].mxu0
      %v737 = vadd.f32 0.0, %v736
      %v738 = vpop.f32.mrb[0].mxu0
      %739 = vdwg.mxu0
      %v740 = vadd.f32 %v592, %v702
      %v741 = vadd.f32 %v593, %v707
      %v742 = vadd.f32 %v594, %v712
      %v743 = vadd.f32 %v595, %v717
      %v744 = vadd.f32 %v596, %v722
      %v745 = vadd.f32 %v597, %v727
      %v746 = vadd.f32 %v598, %v732
      %v747 = vadd.f32 %v599, %v737
      %v748 = vld [vmem:[%s2] sm:$0x1]
      %v750 = vlaneseq
      %v751 = vshrl.u32 %v750, 7
      %v752 = vsub.s32 0, %v751
      %v753 = vrot.slane %v748, %v752
      %v755 = vadd.f32 %v740, %v753
      %v756 = vadd.f32 %v741, %v753
      %v757 = vadd.f32 %v742, %v753
      %v758 = vadd.f32 %v743, %v753
      %v759 = vadd.f32 %v744, %v753
      %v760 = vadd.f32 %v745, %v753
      %v761 = vadd.f32 %v746, %v753
      %v762 = vadd.f32 %v747, %v753
      %v763 = vsub.f32 0.0, %v755
      %v764 = vsub.f32 0.0, %v756
      %v765 = vsub.f32 0.0, %v757
      %v766 = vsub.f32 0.0, %v758
      %v767 = vsub.f32 0.0, %v759
      %v768 = vsub.f32 0.0, %v760
      %v769 = vsub.f32 0.0, %v761
      %v770 = vsub.f32 0.0, %v762
      %v771 = vmul.f32 %v763, 1.442695
      %v772 = vpow.pop %v771
      %v773 = vmul.f32 %v764, 1.442695
      %v774 = vpow.pop %v773
      %v775 = vmul.f32 %v765, 1.442695
      %v776 = vpow.pop %v775
      %v777 = vmul.f32 %v766, 1.442695
      %v778 = vpow.pop %v777
      %v779 = vmul.f32 %v767, 1.442695
      %v780 = vpow.pop %v779
      %v781 = vmul.f32 %v768, 1.442695
      %v782 = vpow.pop %v781
      %v783 = vmul.f32 %v769, 1.442695
      %v784 = vpow.pop %v783
      %v785 = vmul.f32 %v770, 1.442695
      %v786 = vpow.pop %v785
      %v787 = vadd.f32 %v772, 1.0
      %v788 = vadd.f32 %v774, 1.0
      %v789 = vadd.f32 %v776, 1.0
      %v790 = vadd.f32 %v778, 1.0
      %v791 = vadd.f32 %v780, 1.0
      %v792 = vadd.f32 %v782, 1.0
      %v793 = vadd.f32 %v784, 1.0
      %v794 = vadd.f32 %v786, 1.0
      %v795 = vrcp.pop %v787
      %v796 = vmul.f32 1.0, %v795
      %v797 = vrcp.pop %v788
      %v798 = vmul.f32 1.0, %v797
      %v799 = vrcp.pop %v789
      %v800 = vmul.f32 1.0, %v799
      %v801 = vrcp.pop %v790
      %v802 = vmul.f32 1.0, %v801
      %v803 = vrcp.pop %v791
      %v804 = vmul.f32 1.0, %v803
      %v805 = vrcp.pop %v792
      %v806 = vmul.f32 1.0, %v805
      %v807 = vrcp.pop %v793
      %v808 = vmul.f32 1.0, %v807
      %v809 = vrcp.pop %v794
      %v810 = vmul.f32 1.0, %v809
      %v811 = vmul.f32 %v755, %v796
      %v812 = vmul.f32 %v756, %v798
      %v813 = vmul.f32 %v757, %v800
      %v814 = vmul.f32 %v758, %v802
      %v815 = vmul.f32 %v759, %v804
      %v816 = vmul.f32 %v760, %v806
      %v817 = vmul.f32 %v761, %v808
      %v818 = vmul.f32 %v762, %v810
      %vm819 = vcmask 64512
      %820 = vst.msk [vmem:[%s170] sm:$0xff] %vm819, %v811
      %821 = vst.msk [vmem:[%s170 + $0x8] sm:$0xff] %vm819, %v812
      %822 = vst.msk [vmem:[%s170 + $0x10] sm:$0xff] %vm819, %v813
      %823 = vst.msk [vmem:[%s170 + $0x18] sm:$0xff] %vm819, %v814
      %824 = vst.msk [vmem:[%s170 + $0x20] sm:$0xff] %vm819, %v815
      %825 = vst.msk [vmem:[%s170 + $0x28] sm:$0xff] %vm819, %v816
      %826 = vst.msk [vmem:[%s170 + $0x30] sm:$0xff] %vm819, %v817
      %827 = vst.msk [vmem:[%s170 + $0x38] sm:$0xff] %vm819, %v818
      %p828 = scmp.lt.s32.totalorder %s14, 1
      %s829 = scalar_select %p828, %s14, 1
      %s830 = smul.addr %s829, 8
      %s831 = smul.addr %s830, 8
      %s832 = scalar_lea.vmem %s3, %s831
      // Predicated region
      $region33: #{tpu_custom_call.1} parent=31 // pred_check
        %p833 = pneg %p100
      $region34: #{tpu_custom_call.1} parent=31 // pred_check_branch
        %835 = sbr.rel (%p833) target = $region36
      $region35: #{tpu_custom_call.1} parent=31 // pred_region
        _
      $region36: #{tpu_custom_call.1} parent=31 // pred_fallthru
        _
    $region32: #{tpu_custom_call.1} parent=5 // pred_fallthru
      _
    %p836 = scmp.le.s32.totalorder 2, %s9
    // Predicated region
    $region37: #{tpu_custom_call.1} parent=5 // pred_check
      %p837 = pneg %p836
    $region38: #{tpu_custom_call.1} parent=5 // pred_check_branch
      %839 = sbr.rel (%p837) target = $region40
    $region39: #{tpu_custom_call.1} parent=5 // pred_region
      %s840 = ssub.s32 %s9, 2
      // Predicated region
      $region41: #{tpu_custom_call.1} parent=39 // pred_check
        %p841 = pneg %p106
      $region42: #{tpu_custom_call.1} parent=39 // pred_check_branch
        %843 = sbr.rel (%p841) target = $region44
      $region43: #{tpu_custom_call.1} parent=39 // pred_region
        %p844 = scmp.lt.s32.totalorder %s15, 1
        %s845 = scalar_select %p844, %s15, 1
        %s846 = smul.addr %s845, 8
        %s847 = smul.addr %s846, 8
        %s848 = scalar_lea.vmem %s3, %s847
      $region44: #{tpu_custom_call.1} parent=39 // pred_fallthru
        _
    $region40: #{tpu_custom_call.1} parent=5 // pred_fallthru
      _
  $region6: #{tpu_custom_call.1} parent=0 // loop_footer
    %s13 = sadd.s32 1, %s9
  $region7: #{tpu_custom_call.1} parent=0 // loop_footer_branch
    %8 = sbr.rel target = $region3
  $region8: #{tpu_custom_call.1} parent=0 // loop_exit
    _

</llo_original>
